<compile_context>
chip_gen: v6e
topology: v6e:2x2x1
jax: 0.10.0
libtpu: 0.0.40
codegen_flags: <defaults>
</compile_context>

<pallas_src>
import functools

import jax
import jax.numpy as jnp
from jax.experimental import pallas as pl
from jax.experimental.pallas import tpu as pltpu


# ----------------------------------------------------------------------------- helpers
def _bits_to_uniform(shape):
    """Draw raw hardware-PRNG bits and map them to float32 uniforms in [0, 1)."""
    bits = pltpu.prng_random_bits(shape)
    bits = pltpu.bitcast(bits, jnp.uint32)
    # Keep 23 high bits as mantissa, force exponent to [1, 2), subtract 1 -> [0, 1).
    mant = (bits >> jnp.uint32(9)) | jnp.uint32(0x3F800000)
    return pltpu.bitcast(mant, jnp.float32) - 1.0


def _pick_batch_tile(B, D):
    """Largest row tile dividing B (multiple of 8) with the x tile <= 2 MiB f32.

    2 MiB per tile keeps (2x in + 2x out double buffers + ~4 f32 temporaries)
    ~< 20 MiB in flight: inside the 32 MiB scoped-VMEM default on v5e/v6e and
    comfortably inside v7x's 64 MiB physical VMEM.
    """
    max_tile_bytes = 2 * 1024 * 1024
    for tb in (2048, 1024, 512, 256, 128, 64, 32, 16, 8):
        if B % tb == 0 and tb * D * 4 <= max_tile_bytes:
            return tb
    return B  # small / odd batch: single full-extent block


# ----------------------------------------------------------------------------- TPU path
def _tpu_noise_kernel(seed_ref, x_ref, o_ref, *, max_noise_std, two_sided):
    TB, D = x_ref.shape

    # Independent stream per batch tile.
    pltpu.prng_seed(seed_ref[0] + pl.program_id(0))

    # Per-row std: uniform[0, 1) * max_noise_std, one lane-dense draw per tile.
    std = _bits_to_uniform((TB, 128))[:, 0:1] * jnp.float32(max_noise_std)  # (TB, 1)

    x = x_ref[...].astype(jnp.float32)

    if two_sided:
        # Use both Box–Muller outputs: one log+sqrt and one PRNG pair per TWO outputs.
        # (Only taken when half is a multiple of 128 -> unmasked lane-dense stores.)
        half = D // 2
        u1 = _bits_to_uniform((TB, half))
        u2 = _bits_to_uniform((TB, half))
        r = jnp.sqrt(-2.0 * jnp.log(1.0 - u1)) * std          # std folded in once
        theta = (2.0 * jnp.pi) * u2
        o_ref[:, :half] = (x[:, :half] + r * jnp.cos(theta)).astype(o_ref.dtype)
        o_ref[:, half:] = (x[:, half:] + r * jnp.sin(theta)).astype(o_ref.dtype)
    else:
        # General feature dim: single-output Box–Muller, one full-width store.
        u1 = _bits_to_uniform((TB, D))
        u2 = _bits_to_uniform((TB, D))
        r = jnp.sqrt(-2.0 * jnp.log(1.0 - u1)) * std
        o_ref[...] = (x + r * jnp.cos((2.0 * jnp.pi) * u2)).astype(o_ref.dtype)


def _gaussian_noise_tpu(x, seed, max_noise_std):
    B, D = x.shape
    TB = _pick_batch_tile(B, D)
    # Two-sided path only when each half is lane-aligned (multiple of 128).
    two_sided = (D % 256 == 0)
    seed_arr = jnp.asarray([seed], dtype=jnp.int32)

    kernel = functools.partial(
        _tpu_noise_kernel,
        max_noise_std=float(max_noise_std),
        two_sided=two_sided,
    )
    cost = pl.CostEstimate(
        flops=10 * B * D,
        transcendentals=2 * B * D,
        bytes_accessed=2 * B * D * x.dtype.itemsize,
    )
    return pl.pallas_call(
        kernel,
        out_shape=jax.ShapeDtypeStruct((B, D), x.dtype),
        grid_spec=pltpu.PrefetchScalarGridSpec(
            num_scalar_prefetch=1,                       # seed -> SMEM
            grid=(B // TB,),
            in_specs=[pl.BlockSpec((TB, D), lambda i, seed: (i, 0))],
            out_specs=pl.BlockSpec((TB, D), lambda i, seed: (i, 0)),
        ),
        compiler_params=pltpu.CompilerParams(
            dimension_semantics=("parallel",),           # megacore on v7x
        ),
        cost_estimate=cost,
    )(seed_arr, x)


# ----------------------------------------------------------------------------- portable fallback
def _fallback_kernel(x_ref, z_ref, s_ref, o_ref):
    o_ref[...] = (x_ref[...].astype(jnp.float32)
                  + z_ref[...] * s_ref[...]).astype(o_ref.dtype)


def _gaussian_noise_fallback(x, seed, max_noise_std):
    # pltpu.prng_* has no lowering on non-TPU backends: draw the randoms with
    # jax.random, fuse the per-row scale + add in Pallas.
    B, D = x.shape
    k1, k2 = jax.random.split(jax.random.PRNGKey(seed))
    std = jax.random.uniform(k1, (B, 1), dtype=jnp.float32) * float(max_noise_std)
    z = jax.random.normal(k2, (B, D), dtype=jnp.float32)

    TB = _pick_batch_tile(B, D)
    return pl.pallas_call(
        _fallback_kernel,
        out_shape=jax.ShapeDtypeStruct((B, D), x.dtype),
        grid=(B // TB,),
        in_specs=[
            pl.BlockSpec((TB, D), lambda i: (i, 0)),
            pl.BlockSpec((TB, D), lambda i: (i, 0)),
            pl.BlockSpec((TB, 1), lambda i: (i, 0)),
        ],
        out_specs=pl.BlockSpec((TB, D), lambda i: (i, 0)),
    )(x, z, std)


# ----------------------------------------------------------------------------- public entry
def gaussian_noise(x, seed, max_noise_std=0.1):
    """x: (B, D) float array; seed: python int. Matches GaussianNoise.forward."""
    if jax.default_backend() == "tpu":
        return _gaussian_noise_tpu(x, seed, max_noise_std)
    return _gaussian_noise_fallback(x, seed, max_noise_std)


if __name__ == "__main__":
    key = jax.random.PRNGKey(0)
    B, D = 16, 256
    x = jax.random.normal(key, (B, D), dtype=jnp.float32)

    out = gaussian_noise(x, seed=0, max_noise_std=0.1)
    out = jax.block_until_ready(out)

    assert out.shape == x.shape and out.dtype == x.dtype
    assert bool(jnp.all(jnp.isfinite(out)))
    # Noise should be a small perturbation (per-row std <= 0.1).
    assert float(jnp.max(jnp.abs(out - x))) < 1.0
    print("KERNEL_OK")
</pallas_src>

<mosaic_0001>
module attributes {stable_mosaic.version = 11 : i64} {
  func.func @_fallback_kernel(%arg0: i32, %arg1: memref<16x256xf32, #tpu.memory_space<vmem>>, %arg2: memref<16x256xf32, #tpu.memory_space<vmem>>, %arg3: memref<16x1xf32, #tpu.memory_space<vmem>>, %arg4: memref<16x256xf32, #tpu.memory_space<vmem>>) attributes {dimension_semantics = [#tpu.dimension_semantics<arbitrary>], iteration_bounds = array<i64: 1>, scalar_prefetch = 0 : i64, scratch_operands = 0 : i64, tpu.core_type = #tpu.core_type<tc>, window_params = [{transform_indices = @transform_0, window_bounds = array<i64: 16, 256>}, {transform_indices = @transform_1, window_bounds = array<i64: 16, 256>}, {transform_indices = @transform_2, window_bounds = array<i64: 16, 1>}, {transform_indices = @transform_3, window_bounds = array<i64: 16, 256>}]} {
    %c0 = arith.constant 0 : index
    %c0_0 = arith.constant 0 : index
    %0 = vector.load %arg1[%c0, %c0_0] : memref<16x256xf32, #tpu.memory_space<vmem>>, vector<16x256xf32>
    %c0_1 = arith.constant 0 : index
    %c0_2 = arith.constant 0 : index
    %1 = vector.load %arg2[%c0_1, %c0_2] : memref<16x256xf32, #tpu.memory_space<vmem>>, vector<16x256xf32>
    %c0_3 = arith.constant 0 : index
    %c0_4 = arith.constant 0 : index
    %2 = vector.load %arg3[%c0_3, %c0_4] : memref<16x1xf32, #tpu.memory_space<vmem>>, vector<16x1xf32>
    %3 = vector.broadcast %2 : vector<16x1xf32> to vector<16x256xf32>
    %4 = arith.mulf %1, %3 : vector<16x256xf32>
    %5 = arith.addf %0, %4 : vector<16x256xf32>
    %c0_5 = arith.constant 0 : index
    %c0_6 = arith.constant 0 : index
    %6 = vector.load %arg4[%c0_5, %c0_6] : memref<16x256xf32, #tpu.memory_space<vmem>>, vector<16x256xf32>
    tpu.vector_store %arg4[%c0_5, %c0_6], %5 {strides = array<i32>} : memref<16x256xf32, #tpu.memory_space<vmem>>, vector<16x256xf32>,
    return
  }
  func.func @transform_0(%arg0: i32) -> (i32, i32) {
    %c0_i32 = arith.constant 0 : i32
    %c0_i32_0 = arith.constant 0 : i32
    return %arg0, %c0_i32 : i32, i32
  }
  func.func @transform_1(%arg0: i32) -> (i32, i32) {
    %c0_i32 = arith.constant 0 : i32
    %c0_i32_0 = arith.constant 0 : i32
    return %arg0, %c0_i32 : i32, i32
  }
  func.func @transform_2(%arg0: i32) -> (i32, i32) {
    %c0_i32 = arith.constant 0 : i32
    %c0_i32_0 = arith.constant 0 : i32
    return %arg0, %c0_i32 : i32, i32
  }
  func.func @transform_3(%arg0: i32) -> (i32, i32) {
    %c0_i32 = arith.constant 0 : i32
    %c0_i32_0 = arith.constant 0 : i32
    return %arg0, %c0_i32 : i32, i32
  }
}

</mosaic_0001>

<llo_original>
// kernel: tpu_custom_call.1
$region0: #{tpu_custom_call.1}
  #allocation0 [shape = 'u32[]', space=smem, size = 0x4, offset = 0x4, fixed_abs, tag = 'smem constant byte address 0x4 - core index']
  #allocation1 [shape = 'u32[144,128]{1,0:T(1,128)}', space=vmem, size = 0x12000, scoped, tag = 'internal scratch']
  %s0 = inlined_call_operand.hbm [shape: f32[16,256], index: 0, kind: input, shape index: {}]
  %s1 = inlined_call_operand.hbm [shape: f32[16,256], index: 1, kind: input, shape index: {}]
  %s2 = inlined_call_operand.vmem [shape: f32[16,1], index: 2, kind: input, shape index: {}]
  %s3 = inlined_call_operand.hbm [shape: f32[16,256], index: 3, kind: output, shape index: {}]
  %s4 = sld [smem:[#allocation0]]
  $region30: #{tpu_custom_call.1} parent=0
    _
  %s6 = ssub.s32 1, %s4
  %s7 = scalar_select 0, %s6, %s4
  $region1: #{tpu_custom_call.1} parent=0
    #allocation2 [shape = 'u8[16384]{0}', space=vmem, size = 0x4000, scoped, tag = 'input window, operand 0, single buffered']
    #allocation3 [shape = 's32[1]{0}', space=sflag, size = 0x4, scoped, tag = 'scoped memory for tpu_custom_call.1']
    #allocation4 [shape = 's32[1]{0}', space=sflag, size = 0x4, scoped, tag = 'scoped memory for tpu_custom_call.1']
    #allocation5 [shape = 'u8[16384]{0}', space=vmem, size = 0x4000, scoped, tag = 'input window, operand 1, single buffered']
    #allocation6 [shape = 's32[1]{0}', space=sflag, size = 0x4, scoped, tag = 'scoped memory for tpu_custom_call.1']
    #allocation7 [shape = 'u8[16384]{0}', space=vmem, size = 0x4000, scoped, tag = 'output window, operand 0, single buffered']
    %8 = vsyncpa [#allocation3], 0
    %9 = vsyncpa [#allocation6], 0
    %10 = vsyncpa [#allocation4], 0
    // Predicated region
    $region2: #{tpu_custom_call.1} parent=1 // pred_check
      _
    $region3: #{tpu_custom_call.1} parent=1 // pred_check_branch
      %12 = sbr.rel (0) target = $region5
    $region4: #{tpu_custom_call.1} parent=1 // pred_region
      %s14 = ssub.s32 512, 512
      %15 = vsyncadd [#allocation3], %s14
      %s16 = sshll.u32 [#allocation2], 4
      %s17 = int_to_ptr.vmem [resolvable:$true] %s16
      %22 = dma.hbm_to_vmem [thread:$0]  %s0, 512, %s17, [#allocation3], 256, 256, 16
    $region5: #{tpu_custom_call.1} parent=1 // pred_fallthru
      _
    // Predicated region
    $region6: #{tpu_custom_call.1} parent=1 // pred_check
      _
    $region7: #{tpu_custom_call.1} parent=1 // pred_check_branch
      %24 = sbr.rel (0) target = $region9
    $region8: #{tpu_custom_call.1} parent=1 // pred_region
      %s26 = ssub.s32 512, 512
      %27 = vsyncadd [#allocation6], %s26
      %s28 = sshll.u32 [#allocation5], 4
      %s29 = int_to_ptr.vmem [resolvable:$true] %s28
      %34 = dma.hbm_to_vmem [thread:$0]  %s1, 512, %s29, [#allocation6], 256, 256, 16
    $region9: #{tpu_custom_call.1} parent=1 // pred_fallthru
      _
    // Predicated region
    $region10: #{tpu_custom_call.1} parent=1 // pred_check
      _
    $region11: #{tpu_custom_call.1} parent=1 // pred_check_branch
      %36 = sbr.rel (0) target = $region13
    $region12: #{tpu_custom_call.1} parent=1 // pred_region
      _
    $region13: #{tpu_custom_call.1} parent=1 // pred_fallthru
      _
    // Predicated region
    $region14: #{tpu_custom_call.1} parent=1 // pred_check
      _
    $region15: #{tpu_custom_call.1} parent=1 // pred_check_branch
      %38 = sbr.rel (0) target = $region17
    $region16: #{tpu_custom_call.1} parent=1 // pred_region
      %39 = dma.done [#allocation3], 512
    $region17: #{tpu_custom_call.1} parent=1 // pred_fallthru
      _
    // Predicated region
    $region18: #{tpu_custom_call.1} parent=1 // pred_check
      _
    $region19: #{tpu_custom_call.1} parent=1 // pred_check_branch
      %41 = sbr.rel (0) target = $region21
    $region20: #{tpu_custom_call.1} parent=1 // pred_region
      %42 = dma.done [#allocation6], 512
    $region21: #{tpu_custom_call.1} parent=1 // pred_fallthru
      _
    %v43 = vld [vmem:[#allocation2] sm:$0xff]
    %v44 = vld [vmem:[#allocation2 + $0x8] sm:$0xff]
    %v45 = vld [vmem:[#allocation2 + $0x10] sm:$0xff]
    %v46 = vld [vmem:[#allocation2 + $0x18] sm:$0xff]
    %v47 = vld [vmem:[#allocation5] sm:$0xff]
    %v48 = vld [vmem:[#allocation5 + $0x8] sm:$0xff]
    %v49 = vld [vmem:[#allocation5 + $0x10] sm:$0xff]
    %v50 = vld [vmem:[#allocation5 + $0x18] sm:$0xff]
    %v51 = vld [vmem:[%s2] sm:$0xff]
    %v52 = vld [vmem:[%s2 + $0x8] sm:$0xff]
    %54 = vset.pattern.permute.xlu0 0
    %55 = vperm.xlu0 %54, %v51
    %v56 = vpop.permute.xlu0 %55
    %59 = vset.pattern.permute.xlu0 0
    %60 = vperm.xlu0 %59, %v52
    %v61 = vpop.permute.xlu0 %60
    %v63 = vmul.f32 %v47, %v56
    %v64 = vmul.f32 %v48, %v56
    %v65 = vmul.f32 %v49, %v61
    %v66 = vmul.f32 %v50, %v61
    %v67 = vadd.f32 %v43, %v63
    %v68 = vadd.f32 %v44, %v64
    %v69 = vadd.f32 %v45, %v65
    %v70 = vadd.f32 %v46, %v66
    %71 = vst [vmem:[#allocation7] sm:$0xff] %v67
    %72 = vst [vmem:[#allocation7 + $0x8] sm:$0xff] %v68
    %73 = vst [vmem:[#allocation7 + $0x10] sm:$0xff] %v69
    %74 = vst [vmem:[#allocation7 + $0x18] sm:$0xff] %v70
    // Predicated region
    $region22: #{tpu_custom_call.1} parent=1 // pred_check
      _
    $region23: #{tpu_custom_call.1} parent=1 // pred_check_branch
      %76 = sbr.rel (0) target = $region25
    $region24: #{tpu_custom_call.1} parent=1 // pred_region
      %s78 = ssub.s32 512, 512
      %79 = vsyncadd [#allocation4], %s78
      %s80 = sshll.u32 [#allocation7], 4
      %s81 = int_to_ptr.vmem [resolvable:$true] %s80
      %86 = dma.vmem_to_hbm [thread:$0]  %s81, 512, %s3, [#allocation4], 256, 256, 16
    $region25: #{tpu_custom_call.1} parent=1 // pred_fallthru
      _
    // Predicated region
    $region26: #{tpu_custom_call.1} parent=1 // pred_check
      _
    $region27: #{tpu_custom_call.1} parent=1 // pred_check_branch
      %88 = sbr.rel (0) target = $region29
    $region28: #{tpu_custom_call.1} parent=1 // pred_region
      %89 = dma.done [#allocation4], 512
    $region29: #{tpu_custom_call.1} parent=1 // pred_fallthru
      _
    %90 = vsyncpa [#allocation3], 1
    %91 = vsyncpa [#allocation6], 1
    %92 = vsyncpa [#allocation4], 1

</llo_original>
